<compile_context>
chip_gen: v5e
topology: v5e:2x2
jax: 0.10.0
libtpu: 0.0.40
codegen_flags: <defaults>
</compile_context>

<pallas_src>
import functools

import jax
import jax.numpy as jnp
from jax.experimental import pallas as pl
from jax.experimental.pallas import tpu as pltpu

K_FLOWS = 4  # number of planar flows composed by the model


def planar_flow_stack_kernel(z_ref, w_ref, ut_ref, diag_ref, b_ref, s_ref,
                             z_out_ref, ld_out_ref, t_ref, *, num_flows):
    """Applies K planar flows to one (TB, D) batch tile.

    z_ref:      (TB, D) input samples (natural HBM layout, no wrapper transpose)
    w_ref:      (K, D)  per-flow w vectors          (VMEM, grid-resident)
    ut_ref:     (D, K)  per-flow u vectors, transposed (VMEM, grid-resident)
    diag_ref:   (K, 1)  w_k . u_k                   (VMEM, grid-resident)
    b_ref:      (K,)    per-flow biases             (SMEM scalars)
    s_ref:      (K, K)  S[k, j] = w_k . u_j         (SMEM scalars)
    z_out_ref:  (TB, D) transformed samples
    ld_out_ref: (1, TB) accumulated log-determinant per sample (lane-dense)
    t_ref:      (K, TB) VMEM scratch holding the tanh activations
    """
    z0 = z_ref[...].astype(jnp.float32)                        # (TB, D)

    # a0[k, s] = w_k . z0[s] : one NT MXU contraction; batch stays on lanes,
    # no transpose of the tile is materialized.
    a0 = jax.lax.dot_general(
        w_ref[...].astype(jnp.float32), z0,
        dimension_numbers=(((1,), (1,)), ((), ())),
        preferred_element_type=jnp.float32)                    # (K, TB)

    # Sequential-in-k tanh recurrence on lane-dense (1, TB) rows.  Exact
    # algebraic identity with the sequential reference:
    #   a_k = w_k . z_{k-1} + b_k = a0[k] + b_k + sum_{j<k} S[k, j] * t_j
    ts = []
    for k in range(num_flows):
        a_k = a0[k:k + 1, :] + b_ref[k]                        # (1, TB)
        for j in range(k):
            a_k = a_k + s_ref[k, j] * ts[j]
        t_k = jnp.tanh(a_k)                                    # (1, TB)
        ts.append(t_k)
        t_ref[k:k + 1, :] = t_k            # stack rows w/o sublane concatenate

    t_mat = t_ref[...]                                         # (K, TB)

    # Log-determinant, batched over all K flows at once and reduced over the
    # (small) sublane axis: ld[s] = sum_k log|1 + (1 - t_k^2) * (w_k . u_k)|.
    det = 1.0 + (1.0 - t_mat * t_mat) * diag_ref[...]          # (K, TB)
    ld_out_ref[...] = jnp.sum(jnp.log(jnp.abs(det)), axis=0, keepdims=True)

    # z_out = z0 + U^T @ T : computed lane-dense as (D, TB) on the MXU, then
    # transposed back once on the XLU before the single (TB, D) store.
    upd_t = jnp.dot(ut_ref[...].astype(jnp.float32), t_mat,
                    preferred_element_type=jnp.float32)        # (D, TB)
    z_out_ref[...] = (z0 + jnp.transpose(upd_t)).astype(z_out_ref.dtype)


def _round_up(x, m):
    return ((x + m - 1) // m) * m


def _choose_batch_tile(b, tb_target):
    """Full-extent tile for small batches; otherwise a multiple of 128 with
    >= 2 grid steps (v7x megacore) bounded by tb_target (VMEM budget)."""
    if b < 256:
        return b
    tb = min(tb_target, _round_up((b + 1) // 2, 128))
    return max(128, (tb // 128) * 128)


def simple_flow_model(z, u, w, b, *, tb_target=8192):
    """Pallas-backed forward of SimpleFlowModel([PlanarFlow] * K).

    z: (B, D), u/w: (K, D), b: (K, 1).  Returns (z_out (B, D), ld (B,)).
    """
    B, D = z.shape
    K = w.shape[0]

    # Parameter-only precompute (tiny; outside the kernel).
    w32 = w.astype(jnp.float32)
    u32 = u.astype(jnp.float32)
    s_mat = jnp.dot(w32, u32.T,
                    precision=jax.lax.Precision.HIGHEST)       # (K, K)
    diag = jnp.diagonal(s_mat)[:, None]                        # (K, 1)
    b_vec = b.reshape(K).astype(jnp.float32)                   # (K,)
    u_t = u32.T                                                # (D, K)

    # Batch tiling.  (tb, 32) f32 block buffers are lane-padded to 128 in VMEM
    # (4x), so tb=8192 costs ~8 MiB per double-buffered direction; with the
    # explicit 40 MiB scoped-VMEM limit this fits v5e (128 MiB physical,
    # 16 MiB default scope), v6e (128/32) and v7x (64/32).  A partial last
    # tile is fine: OOB reads only land in rows whose writes are discarded.
    tb = _choose_batch_tile(B, tb_target)
    grid = (pl.cdiv(B, tb),)

    kernel = functools.partial(planar_flow_stack_kernel, num_flows=K)
    smem = pl.BlockSpec(memory_space=pltpu.MemorySpace.SMEM)

    z_out, ld_out = pl.pallas_call(
        kernel,
        out_shape=(
            jax.ShapeDtypeStruct((B, D), z.dtype),
            jax.ShapeDtypeStruct((1, B), jnp.float32),
        ),
        grid=grid,
        in_specs=[
            pl.BlockSpec((tb, D), lambda i: (i, 0)),   # z tile (pipelined)
            pl.BlockSpec((K, D), lambda i: (0, 0)),    # w        (grid-resident)
            pl.BlockSpec((D, K), lambda i: (0, 0)),    # u^T      (grid-resident)
            pl.BlockSpec((K, 1), lambda i: (0, 0)),    # diag(S)  (grid-resident)
            smem,                                      # b   (K,)   scalars
            smem,                                      # S   (K, K) scalars
        ],
        out_specs=(
            pl.BlockSpec((tb, D), lambda i: (i, 0)),   # z_out tile
            pl.BlockSpec((1, tb), lambda i: (0, i)),   # ld, lane-dense
        ),
        scratch_shapes=[pltpu.VMEM((K, tb), jnp.float32)],
        compiler_params=pltpu.CompilerParams(
            dimension_semantics=("parallel",),
            vmem_limit_bytes=40 * 1024 * 1024),
    )(z, w, u_t, diag, b_vec, s_mat)

    return z_out, ld_out[0]


def constrain_u(u, w):
    """Standard planar-flow invertibility constraint (parameter setup glue)."""
    wu = jnp.sum(w * u, axis=-1, keepdims=True)                # (K, 1)
    m_wu = -1.0 + jax.nn.softplus(wu)
    return u + (m_wu - wu) * w / (jnp.sum(w * w, axis=-1, keepdims=True) + 1e-12)


def reference_forward(z, u, w, b):
    """Pure-JAX reference matching the PyTorch semantics (sequential flows, sum ld)."""
    ld = jnp.zeros((z.shape[0],), jnp.float32)
    for k in range(w.shape[0]):
        a = z @ w[k] + b[k, 0]
        t = jnp.tanh(a)
        z = z + u[k][None, :] * t[:, None]
        det = 1.0 + (1.0 - t * t) * jnp.sum(w[k] * u[k])
        ld = ld + jnp.log(jnp.abs(det))
    return z, ld


if __name__ == "__main__":
    B, D = 8, 32

    key = jax.random.PRNGKey(0)
    kz, ku, kw, kb = jax.random.split(key, 4)

    z = jax.random.normal(kz, (B, D), dtype=jnp.float32)
    u_raw = 0.1 * jax.random.normal(ku, (K_FLOWS, D), dtype=jnp.float32)
    w = 0.1 * jax.random.normal(kw, (K_FLOWS, D), dtype=jnp.float32)
    b = 0.1 * jax.random.normal(kb, (K_FLOWS, 1), dtype=jnp.float32)
    u = constrain_u(u_raw, w)  # deterministic parameter setup (glue, outside kernel)

    z_out, ld_out = simple_flow_model(z, u, w, b)
    jax.block_until_ready((z_out, ld_out))

    z_ref, ld_ref = reference_forward(z, u, w, b)
    assert z_out.shape == (B, D) and ld_out.shape == (B,)
    # Tolerances account for MXU f32 (bf16-pass) rounding in the two tiny dots.
    assert jnp.allclose(z_out, z_ref, atol=1e-4, rtol=1e-4)
    assert jnp.allclose(ld_out, ld_ref, atol=1e-4, rtol=1e-4)

    print("KERNEL_OK")
</pallas_src>

<mosaic_0001>
module attributes {stable_mosaic.version = 11 : i64} {
  func.func @planar_flow_stack_kernel(%arg0: i32, %arg1: memref<8x32xf32, #tpu.memory_space<vmem>>, %arg2: memref<4x32xf32, #tpu.memory_space<vmem>>, %arg3: memref<32x4xf32, #tpu.memory_space<vmem>>, %arg4: memref<4x1xf32, #tpu.memory_space<vmem>>, %arg5: memref<4xf32, #tpu.memory_space<smem>>, %arg6: memref<4x4xf32, #tpu.memory_space<smem>>, %arg7: memref<8x32xf32, #tpu.memory_space<vmem>>, %arg8: memref<1x8xf32, #tpu.memory_space<vmem>>, %arg9: memref<4x8xf32, #tpu.memory_space<vmem>>) attributes {dimension_semantics = [#tpu.dimension_semantics<parallel>], iteration_bounds = array<i64: 1>, scalar_prefetch = 0 : i64, scratch_operands = 1 : i64, tpu.core_type = #tpu.core_type<tc>, window_params = [{transform_indices = @transform_0, window_bounds = array<i64: 8, 32>}, {pipeline_mode = #tpu.pipeline_mode<synchronous>, transform_indices = @transform_1, window_bounds = array<i64: 4, 32>}, {pipeline_mode = #tpu.pipeline_mode<synchronous>, transform_indices = @transform_2, window_bounds = array<i64: 32, 4>}, {pipeline_mode = #tpu.pipeline_mode<synchronous>, transform_indices = @transform_3, window_bounds = array<i64: 4, 1>}, {transform_indices = @transform_4, window_bounds = array<i64: 4>}, {transform_indices = @transform_5, window_bounds = array<i64: 4, 4>}, {transform_indices = @transform_6, window_bounds = array<i64: 8, 32>}, {transform_indices = @transform_7, window_bounds = array<i64: 1, 8>}]} {
    %c0 = arith.constant 0 : index
    %c0_0 = arith.constant 0 : index
    %0 = vector.load %arg1[%c0, %c0_0] : memref<8x32xf32, #tpu.memory_space<vmem>>, vector<8x32xf32>
    %c0_1 = arith.constant 0 : index
    %c0_2 = arith.constant 0 : index
    %1 = vector.load %arg2[%c0_1, %c0_2] : memref<4x32xf32, #tpu.memory_space<vmem>>, vector<4x32xf32>
    %cst = arith.constant dense<0.000000e+00> : vector<4x8xf32>
    %2 = tpu.matmul %1, %0, %cst {dimension_numbers = #tpu.dot_dimension_numbers<[1], [1], [0], [0], [0, 0, 1, 0], [], []>} : vector<4x32xf32>, vector<8x32xf32>, vector<4x8xf32> -> vector<4x8xf32>
    %3 = vector.extract_strided_slice %2 {offsets = [0, 0], sizes = [1, 8], strides = [1, 1]} : vector<4x8xf32> to vector<1x8xf32>
    %c0_3 = arith.constant 0 : index
    %4 = memref.load %arg5[%c0_3] : memref<4xf32, #tpu.memory_space<smem>>
    %5 = vector.broadcast %4 : f32 to vector<1x8xf32>
    %6 = arith.addf %3, %5 : vector<1x8xf32>
    %7 = math.tanh %6 : vector<1x8xf32>
    %c0_4 = arith.constant 0 : index
    %c0_5 = arith.constant 0 : index
    %8 = vector.load %arg9[%c0_4, %c0_5] : memref<4x8xf32, #tpu.memory_space<vmem>>, vector<1x8xf32>
    tpu.vector_store %arg9[%c0_4, %c0_5], %7 {strides = array<i32>} : memref<4x8xf32, #tpu.memory_space<vmem>>, vector<1x8xf32>,
    %9 = vector.extract_strided_slice %2 {offsets = [1, 0], sizes = [1, 8], strides = [1, 1]} : vector<4x8xf32> to vector<1x8xf32>
    %c1 = arith.constant 1 : index
    %10 = memref.load %arg5[%c1] : memref<4xf32, #tpu.memory_space<smem>>
    %11 = vector.broadcast %10 : f32 to vector<1x8xf32>
    %12 = arith.addf %9, %11 : vector<1x8xf32>
    %c1_6 = arith.constant 1 : index
    %c0_7 = arith.constant 0 : index
    %13 = memref.load %arg6[%c1_6, %c0_7] : memref<4x4xf32, #tpu.memory_space<smem>>
    %14 = vector.broadcast %13 : f32 to vector<1x8xf32>
    %15 = arith.mulf %14, %7 : vector<1x8xf32>
    %16 = arith.addf %12, %15 : vector<1x8xf32>
    %17 = math.tanh %16 : vector<1x8xf32>
    %c1_8 = arith.constant 1 : index
    %c0_9 = arith.constant 0 : index
    %18 = vector.load %arg9[%c1_8, %c0_9] : memref<4x8xf32, #tpu.memory_space<vmem>>, vector<1x8xf32>
    tpu.vector_store %arg9[%c1_8, %c0_9], %17 {strides = array<i32>} : memref<4x8xf32, #tpu.memory_space<vmem>>, vector<1x8xf32>,
    %19 = vector.extract_strided_slice %2 {offsets = [2, 0], sizes = [1, 8], strides = [1, 1]} : vector<4x8xf32> to vector<1x8xf32>
    %c2 = arith.constant 2 : index
    %20 = memref.load %arg5[%c2] : memref<4xf32, #tpu.memory_space<smem>>
    %21 = vector.broadcast %20 : f32 to vector<1x8xf32>
    %22 = arith.addf %19, %21 : vector<1x8xf32>
    %c2_10 = arith.constant 2 : index
    %c0_11 = arith.constant 0 : index
    %23 = memref.load %arg6[%c2_10, %c0_11] : memref<4x4xf32, #tpu.memory_space<smem>>
    %24 = vector.broadcast %23 : f32 to vector<1x8xf32>
    %25 = arith.mulf %24, %7 : vector<1x8xf32>
    %26 = arith.addf %22, %25 : vector<1x8xf32>
    %c2_12 = arith.constant 2 : index
    %c1_13 = arith.constant 1 : index
    %27 = memref.load %arg6[%c2_12, %c1_13] : memref<4x4xf32, #tpu.memory_space<smem>>
    %28 = vector.broadcast %27 : f32 to vector<1x8xf32>
    %29 = arith.mulf %28, %17 : vector<1x8xf32>
    %30 = arith.addf %26, %29 : vector<1x8xf32>
    %31 = math.tanh %30 : vector<1x8xf32>
    %c2_14 = arith.constant 2 : index
    %c0_15 = arith.constant 0 : index
    %32 = vector.load %arg9[%c2_14, %c0_15] : memref<4x8xf32, #tpu.memory_space<vmem>>, vector<1x8xf32>
    tpu.vector_store %arg9[%c2_14, %c0_15], %31 {strides = array<i32>} : memref<4x8xf32, #tpu.memory_space<vmem>>, vector<1x8xf32>,
    %33 = vector.extract_strided_slice %2 {offsets = [3, 0], sizes = [1, 8], strides = [1, 1]} : vector<4x8xf32> to vector<1x8xf32>
    %c3 = arith.constant 3 : index
    %34 = memref.load %arg5[%c3] : memref<4xf32, #tpu.memory_space<smem>>
    %35 = vector.broadcast %34 : f32 to vector<1x8xf32>
    %36 = arith.addf %33, %35 : vector<1x8xf32>
    %c3_16 = arith.constant 3 : index
    %c0_17 = arith.constant 0 : index
    %37 = memref.load %arg6[%c3_16, %c0_17] : memref<4x4xf32, #tpu.memory_space<smem>>
    %38 = vector.broadcast %37 : f32 to vector<1x8xf32>
    %39 = arith.mulf %38, %7 : vector<1x8xf32>
    %40 = arith.addf %36, %39 : vector<1x8xf32>
    %c3_18 = arith.constant 3 : index
    %c1_19 = arith.constant 1 : index
    %41 = memref.load %arg6[%c3_18, %c1_19] : memref<4x4xf32, #tpu.memory_space<smem>>
    %42 = vector.broadcast %41 : f32 to vector<1x8xf32>
    %43 = arith.mulf %42, %17 : vector<1x8xf32>
    %44 = arith.addf %40, %43 : vector<1x8xf32>
    %c3_20 = arith.constant 3 : index
    %c2_21 = arith.constant 2 : index
    %45 = memref.load %arg6[%c3_20, %c2_21] : memref<4x4xf32, #tpu.memory_space<smem>>
    %46 = vector.broadcast %45 : f32 to vector<1x8xf32>
    %47 = arith.mulf %46, %31 : vector<1x8xf32>
    %48 = arith.addf %44, %47 : vector<1x8xf32>
    %49 = math.tanh %48 : vector<1x8xf32>
    %c3_22 = arith.constant 3 : index
    %c0_23 = arith.constant 0 : index
    %50 = vector.load %arg9[%c3_22, %c0_23] : memref<4x8xf32, #tpu.memory_space<vmem>>, vector<1x8xf32>
    tpu.vector_store %arg9[%c3_22, %c0_23], %49 {strides = array<i32>} : memref<4x8xf32, #tpu.memory_space<vmem>>, vector<1x8xf32>,
    %c0_24 = arith.constant 0 : index
    %c0_25 = arith.constant 0 : index
    %51 = vector.load %arg9[%c0_24, %c0_25] : memref<4x8xf32, #tpu.memory_space<vmem>>, vector<4x8xf32>
    %52 = arith.mulf %51, %51 : vector<4x8xf32>
    %cst_26 = arith.constant 1.000000e+00 : f32
    %53 = vector.broadcast %cst_26 : f32 to vector<4x8xf32>
    %54 = arith.subf %53, %52 : vector<4x8xf32>
    %c0_27 = arith.constant 0 : index
    %c0_28 = arith.constant 0 : index
    %55 = vector.load %arg4[%c0_27, %c0_28] : memref<4x1xf32, #tpu.memory_space<vmem>>, vector<4x1xf32>
    %56 = vector.broadcast %55 : vector<4x1xf32> to vector<4x8xf32>
    %57 = arith.mulf %54, %56 : vector<4x8xf32>
    %cst_29 = arith.constant 1.000000e+00 : f32
    %58 = vector.broadcast %cst_29 : f32 to vector<4x8xf32>
    %59 = arith.addf %58, %57 : vector<4x8xf32>
    %60 = math.absf %59 : vector<4x8xf32>
    %61 = math.log %60 : vector<4x8xf32>
    %cst_30 = arith.constant dense<0.000000e+00> : vector<8xf32>
    %62 = vector.multi_reduction <add>, %61, %cst_30 [0] : vector<4x8xf32> to vector<8xf32>
    %63 = vector.shape_cast %62 : vector<8xf32> to vector<1x8xf32>
    %c0_31 = arith.constant 0 : index
    %c0_32 = arith.constant 0 : index
    %64 = vector.load %arg8[%c0_31, %c0_32] : memref<1x8xf32, #tpu.memory_space<vmem>>, vector<1x8xf32>
    tpu.vector_store %arg8[%c0_31, %c0_32], %63 {strides = array<i32>} : memref<1x8xf32, #tpu.memory_space<vmem>>, vector<1x8xf32>,
    %c0_33 = arith.constant 0 : index
    %c0_34 = arith.constant 0 : index
    %65 = vector.load %arg3[%c0_33, %c0_34] : memref<32x4xf32, #tpu.memory_space<vmem>>, vector<32x4xf32>
    %cst_35 = arith.constant dense<0.000000e+00> : vector<32x8xf32>
    %66 = tpu.matmul %65, %51, %cst_35 {dimension_numbers = #tpu.dot_dimension_numbers<[1], [0], [0], [1], [0, 0, 1, 1], [], []>} : vector<32x4xf32>, vector<4x8xf32>, vector<32x8xf32> -> vector<32x8xf32>
    %67 = tpu.transpose %66, [1, 0] : vector<32x8xf32> -> vector<8x32xf32>
    %68 = arith.addf %0, %67 : vector<8x32xf32>
    %c0_36 = arith.constant 0 : index
    %c0_37 = arith.constant 0 : index
    %69 = vector.load %arg7[%c0_36, %c0_37] : memref<8x32xf32, #tpu.memory_space<vmem>>, vector<8x32xf32>
    tpu.vector_store %arg7[%c0_36, %c0_37], %68 {strides = array<i32>} : memref<8x32xf32, #tpu.memory_space<vmem>>, vector<8x32xf32>,
    return
  }
  func.func @transform_0(%arg0: i32) -> (i32, i32) {
    %c0_i32 = arith.constant 0 : i32
    %c0_i32_0 = arith.constant 0 : i32
    return %arg0, %c0_i32 : i32, i32
  }
  func.func @transform_1(%arg0: i32) -> (i32, i32) {
    %c0_i32 = arith.constant 0 : i32
    %c0_i32_0 = arith.constant 0 : i32
    %c0_i32_1 = arith.constant 0 : i32
    return %c0_i32, %c0_i32_0 : i32, i32
  }
  func.func @transform_2(%arg0: i32) -> (i32, i32) {
    %c0_i32 = arith.constant 0 : i32
    %c0_i32_0 = arith.constant 0 : i32
    %c0_i32_1 = arith.constant 0 : i32
    return %c0_i32, %c0_i32_0 : i32, i32
  }
  func.func @transform_3(%arg0: i32) -> (i32, i32) {
    %c0_i32 = arith.constant 0 : i32
    %c0_i32_0 = arith.constant 0 : i32
    %c0_i32_1 = arith.constant 0 : i32
    return %c0_i32, %c0_i32_0 : i32, i32
  }
  func.func @transform_4(%arg0: i32) -> i32 {
    %c0_i32 = arith.constant 0 : i32
    %c0_i32_0 = arith.constant 0 : i32
    return %c0_i32 : i32
  }
  func.func @transform_5(%arg0: i32) -> (i32, i32) {
    %c0_i32 = arith.constant 0 : i32
    %c0_i32_0 = arith.constant 0 : i32
    %c0_i32_1 = arith.constant 0 : i32
    return %c0_i32, %c0_i32_0 : i32, i32
  }
  func.func @transform_6(%arg0: i32) -> (i32, i32) {
    %c0_i32 = arith.constant 0 : i32
    %c0_i32_0 = arith.constant 0 : i32
    return %arg0, %c0_i32 : i32, i32
  }
  func.func @transform_7(%arg0: i32) -> (i32, i32) {
    %c0_i32 = arith.constant 0 : i32
    %c0_i32_0 = arith.constant 0 : i32
    return %c0_i32, %arg0 : i32, i32
  }
}

</mosaic_0001>

<llo_original>
// kernel: tpu_custom_call.1
$region0: #{tpu_custom_call.1}
  #allocation0 [shape = 'u32[]', space=smem, size = 0x4, offset = 0x4, fixed_abs, tag = 'smem constant byte address 0x4 - core index']
  #allocation1 [shape = 'u32[72,128]{1,0:T(1,128)}', space=vmem, size = 0x9000, scoped, tag = 'internal scratch']
  #allocation2 [shape = 'f32[4,8]{1,0:T(4,128)}', space=vmem, size = 0x800, scoped, tag = 'scratch operand']
  %s0 = inlined_call_operand.vmem [shape: f32[8,32], index: 0, kind: input, shape index: {}]
  %s1 = inlined_call_operand.vmem [shape: f32[4,32], index: 1, kind: input, shape index: {}]
  %s2 = inlined_call_operand.vmem [shape: f32[32,4], index: 2, kind: input, shape index: {}]
  %s3 = inlined_call_operand.vmem [shape: f32[4,1], index: 3, kind: input, shape index: {}]
  %s4 = inlined_call_operand.vmem [shape: f32[4], index: 4, kind: input, shape index: {}]
  %s5 = inlined_call_operand.vmem [shape: f32[4,4], index: 5, kind: input, shape index: {}]
  %s6 = inlined_call_operand.hbm [shape: f32[8,32], index: 6, kind: output, shape index: {0}]
  %s7 = inlined_call_operand.hbm [shape: f32[1,8], index: 7, kind: output, shape index: {1}]
  %8 = xla_tuple %s6, %s7
  %s9 = sld [smem:[#allocation0]]
  $region50: #{tpu_custom_call.1} parent=0
    _
  %s11 = ssub.s32 1, %s9
  %s12 = scalar_select 0, %s11, %s9
  $region1: #{tpu_custom_call.1} parent=0
    #allocation3 [shape = 'u8[512]{0}', space=smem, size = 0x200, scoped, tag = 'input window, operand 4, single buffered']
    #allocation4 [shape = 's32[1]{0}', space=sflag, size = 0x4, scoped, tag = 'scoped memory for tpu_custom_call.1']
    #allocation5 [shape = 's32[1]{0}', space=sflag, size = 0x4, scoped, tag = 'scoped memory for tpu_custom_call.1']
    #allocation6 [shape = 'u8[2048]{0}', space=smem, size = 0x800, scoped, tag = 'input window, operand 5, single buffered']
    #allocation7 [shape = 's32[1]{0}', space=sflag, size = 0x4, scoped, tag = 'scoped memory for tpu_custom_call.1']
    #allocation8 [shape = 'u8[4096]{0}', space=vmem, size = 0x1000, scoped, tag = 'output window, operand 0, single buffered']
    #allocation9 [shape = 'u8[512]{0}', space=vmem, size = 0x400, scoped, tag = 'output window, operand 1, single buffered']
    #allocation10 [shape = 's32[1]{0}', space=sflag, size = 0x4, scoped, tag = 'scoped memory for tpu_custom_call.1']
    %13 = vsyncpa [#allocation5], 0
    %14 = vsyncpa [#allocation7], 0
    %15 = vsyncpa [#allocation4], 0
    %16 = vsyncpa [#allocation10], 0
    // Predicated region
    $region2: #{tpu_custom_call.1} parent=1 // pred_check
      _
    $region3: #{tpu_custom_call.1} parent=1 // pred_check_branch
      %18 = sbr.rel (0) target = $region5
    $region4: #{tpu_custom_call.1} parent=1 // pred_region
      _
    $region5: #{tpu_custom_call.1} parent=1 // pred_fallthru
      _
    // Predicated region
    $region6: #{tpu_custom_call.1} parent=1 // pred_check
      _
    $region7: #{tpu_custom_call.1} parent=1 // pred_check_branch
      %20 = sbr.rel (0) target = $region9
    $region8: #{tpu_custom_call.1} parent=1 // pred_region
      _
    $region9: #{tpu_custom_call.1} parent=1 // pred_fallthru
      _
    // Predicated region
    $region10: #{tpu_custom_call.1} parent=1 // pred_check
      _
    $region11: #{tpu_custom_call.1} parent=1 // pred_check_branch
      %22 = sbr.rel (0) target = $region13
    $region12: #{tpu_custom_call.1} parent=1 // pred_region
      _
    $region13: #{tpu_custom_call.1} parent=1 // pred_fallthru
      _
    // Predicated region
    $region14: #{tpu_custom_call.1} parent=1 // pred_check
      _
    $region15: #{tpu_custom_call.1} parent=1 // pred_check_branch
      %24 = sbr.rel (0) target = $region17
    $region16: #{tpu_custom_call.1} parent=1 // pred_region
      _
    $region17: #{tpu_custom_call.1} parent=1 // pred_fallthru
      _
    // Predicated region
    $region18: #{tpu_custom_call.1} parent=1 // pred_check
      _
    $region19: #{tpu_custom_call.1} parent=1 // pred_check_branch
      %26 = sbr.rel (0) target = $region21
    $region20: #{tpu_custom_call.1} parent=1 // pred_region
      %28 = vsyncadd [#allocation5], 0
      %s30 = sshll.u32 %s4, 4
      %s31 = int_to_ptr.vmem [resolvable:$true] %s30
      %33 = dma.vmem_to_smem %s31, 16, [#allocation3], [#allocation5]
    $region21: #{tpu_custom_call.1} parent=1 // pred_fallthru
      _
    // Predicated region
    $region22: #{tpu_custom_call.1} parent=1 // pred_check
      _
    $region23: #{tpu_custom_call.1} parent=1 // pred_check_branch
      %35 = sbr.rel (0) target = $region25
    $region24: #{tpu_custom_call.1} parent=1 // pred_region
      %37 = vsyncadd [#allocation7], 0
      %s39 = sshll.u32 %s5, 4
      %s40 = int_to_ptr.vmem [resolvable:$true] %s39
      %42 = dma.vmem_to_smem %s40, 64, [#allocation6], [#allocation7]
    $region25: #{tpu_custom_call.1} parent=1 // pred_fallthru
      _
    // Predicated region
    $region26: #{tpu_custom_call.1} parent=1 // pred_check
      _
    $region27: #{tpu_custom_call.1} parent=1 // pred_check_branch
      %44 = sbr.rel (0) target = $region29
    $region28: #{tpu_custom_call.1} parent=1 // pred_region
      %46 = dma.done [#allocation5], 16
    $region29: #{tpu_custom_call.1} parent=1 // pred_fallthru
      _
    // Predicated region
    $region30: #{tpu_custom_call.1} parent=1 // pred_check
      _
    $region31: #{tpu_custom_call.1} parent=1 // pred_check_branch
      %48 = sbr.rel (0) target = $region33
    $region32: #{tpu_custom_call.1} parent=1 // pred_region
      %50 = dma.done [#allocation7], 64
    $region33: #{tpu_custom_call.1} parent=1 // pred_fallthru
      _
    %51 = sfence
    %v52 = vld [vmem:[%s0] sm:$0xff]
    %v53 = vld [vmem:[%s1] sm:$0xf]
    %vm54 = vcmask 261120
    %v56 = vsel %vm54, %v53, 0
    %v59 = vsel %vm54, %v52, 0
    %61 = vmatpush.xpose.msra.mxu0 0.0
    %62 = vmatpush.xpose.msra.mxu0 0.0
    %63 = vmatpush.xpose.msra.mxu0 0.0
    %64 = vmatpush.xpose.msra.mxu0 0.0
    %65 = vmatpush.xpose.msra.mxu0 0.0
    %66 = vmatpush.xpose.msra.mxu0 0.0
    %67 = vmatpush.xpose.msra.mxu0 0.0
    %68 = vmatpush.xpose.msra.mxu0 0.0
    %69 = vmatpush.xpose.msra.mxu0 0.0
    %70 = vmatpush.xpose.msra.mxu0 0.0
    %71 = vmatpush.xpose.msra.mxu0 0.0
    %72 = vmatpush.xpose.msra.mxu0 0.0
    %73 = vmatpush.xpose.msra.mxu0 0.0
    %74 = vmatpush.xpose.msra.mxu0 0.0
    %75 = vmatpush.xpose.msra.mxu0 0.0
    %76 = vmatpush.xpose.msra.mxu0 %v59
    %77 = vmatmul.f32.gmra.mxu0 %v56
    %v78 = vpop.f32.mrf.mxu0
    %v79 = vadd.f32 0.0, %v78
    %80 = vdwg.mxu0
    %s81 = sld [smem:[#allocation3]]
    %v82 = vstv %s81
    %v83 = vadd.f32 %v79, %v82
    %v84 = vtanh.pop %v83
    %vm85 = vcmask 57344
    %86 = vst.msk [vmem:[#allocation2] sm:$0x1] %vm85, %v84
    %s87 = sld [smem:[#allocation3 + $0x1]]
    %v88 = vstv %s87
    %v89 = vadd.f32 %v79, %v88
    %s90 = sld [smem:[#allocation6 + $0x80]]
    %v91 = vstv %s90
    %v92 = vmul.f32 %v91, %v84
    %v94 = vrot.slane %v92, 7
    %v96 = vadd.f32 %v89, %v94
    %v97 = vtanh.pop %v96
    %vm98 = vcmask 58369
    %99 = vst.msk [vmem:[#allocation2] sm:$0x2] %vm98, %v97
    %s100 = sld [smem:[#allocation3 + $0x2]]
    %v101 = vstv %s100
    %v102 = vadd.f32 %v79, %v101
    %s103 = sld [smem:[#allocation6 + $0x100]]
    %v104 = vstv %s103
    %v105 = vmul.f32 %v104, %v84
    %v107 = vrot.slane %v105, 6
    %v109 = vadd.f32 %v102, %v107
    %s110 = sld [smem:[#allocation6 + $0x101]]
    %v111 = vstv %s110
    %v112 = vmul.f32 %v111, %v97
    %v114 = vrot.slane %v112, 7
    %v116 = vadd.f32 %v109, %v114
    %v117 = vtanh.pop %v116
    %vm118 = vcmask 59394
    %119 = vst.msk [vmem:[#allocation2] sm:$0x4] %vm118, %v117
    %s120 = sld [smem:[#allocation3 + $0x3]]
    %v121 = vstv %s120
    %v122 = vadd.f32 %v79, %v121
    %s123 = sld [smem:[#allocation6 + $0x180]]
    %v124 = vstv %s123
    %v125 = vmul.f32 %v124, %v84
    %v127 = vrot.slane %v125, 5
    %v129 = vadd.f32 %v122, %v127
    %s130 = sld [smem:[#allocation6 + $0x181]]
    %v131 = vstv %s130
    %v132 = vmul.f32 %v131, %v97
    %v134 = vrot.slane %v132, 6
    %v136 = vadd.f32 %v129, %v134
    %s137 = sld [smem:[#allocation6 + $0x182]]
    %v138 = vstv %s137
    %v139 = vmul.f32 %v138, %v117
    %v141 = vrot.slane %v139, 7
    %v143 = vadd.f32 %v136, %v141
    %v144 = vtanh.pop %v143
    %vm145 = vcmask 60419
    %146 = vst.msk [vmem:[#allocation2] sm:$0x8] %vm145, %v144
    %v147 = vld [vmem:[#allocation2] sm:$0xf]
    %v148 = vmul.f32 %v147, %v147
    %v149 = vsub.f32 1.0, %v148
    %v150 = vld [vmem:[%s3] sm:$0xf]
    %152 = vset.pattern.permute.xlu0 0
    %153 = vperm.xlu0 %152, %v150
    %v154 = vpop.permute.xlu0 %153
    %v156 = vmul.f32 %v149, %v154
    %v157 = vadd.f32 %v156, 1.0
    %v158 = vand.u32 2147483647, %v157
    %v159 = vlog2.pop %v158
    %v160 = vmul.f32 %v159, 0.6931472
    %vm161 = vcmask 60416
    %v162 = vsel %vm161, %v160, 0.0
    %v163 = vrot.slane %v162, 4
    %v164 = vadd.f32 %v162, %v163
    %v165 = vrot.slane %v164, 2
    %v166 = vadd.f32 %v164, %v165
    %v167 = vrot.slane %v166, 1
    %v168 = vadd.f32 %v166, %v167
    %169 = vst.msk [vmem:[#allocation9] sm:$0x1] %vm85, %v168
    %v170 = vld [vmem:[%s2] sm:$0xff]
    %v171 = vld [vmem:[%s2 + $0x8] sm:$0xff]
    %v172 = vld [vmem:[%s2 + $0x10] sm:$0xff]
    %v173 = vld [vmem:[%s2 + $0x18] sm:$0xff]
    %vm174 = vcmask 31744
    %v176 = vsel %vm174, %v170, 0
    %v179 = vsel %vm174, %v171, 0
    %v182 = vsel %vm174, %v172, 0
    %v185 = vsel %vm174, %v173, 0
    %vm187 = vcmask 1043456
    %v189 = vsel %vm187, %v147, 0
    %191 = vmatpush.msra.mxu0 0.0
    %192 = vmatpush.msra.mxu0 0.0
    %193 = vmatpush.msra.mxu0 0.0
    %194 = vmatpush.msra.mxu0 0.0
    %195 = vmatpush.msra.mxu0 0.0
    %196 = vmatpush.msra.mxu0 0.0
    %197 = vmatpush.msra.mxu0 0.0
    %198 = vmatpush.msra.mxu0 0.0
    %199 = vmatpush.msra.mxu0 0.0
    %200 = vmatpush.msra.mxu0 0.0
    %201 = vmatpush.msra.mxu0 0.0
    %202 = vmatpush.msra.mxu0 0.0
    %203 = vmatpush.msra.mxu0 0.0
    %204 = vmatpush.msra.mxu0 0.0
    %205 = vmatpush.msra.mxu0 0.0
    %206 = vmatpush.msra.mxu0 %v189
    %207 = vmatmul.f32.gmra.mxu0 %v176
    %v208 = vpop.f32.mrf.mxu0
    %v209 = vadd.f32 0.0, %v208
    %210 = vmatmul.f32.gmra.mxu0 %v179
    %v211 = vpop.f32.mrf.mxu0
    %v212 = vadd.f32 0.0, %v211
    %213 = vmatmul.f32.gmra.mxu0 %v182
    %v214 = vpop.f32.mrf.mxu0
    %v215 = vadd.f32 0.0, %v214
    %216 = vmatmul.f32.gmra.mxu0 %v185
    %v217 = vpop.f32.mrf.mxu0
    %v218 = vadd.f32 0.0, %v217
    %219 = vdwg.mxu0
    %220 = vxpose.xlu0.b32.start [1/16] %v209, 128
    %221 = vxpose.xlu0.b32.cont [2/16] %v212, 128
    %222 = vxpose.xlu0.b32.cont [3/16] %v215, 128
    %223 = vxpose.xlu0.b32.cont [4/16] %v218, 128
    %224 = vxpose.xlu0.b32.cont [5/16] 0.0, 128
    %225 = vxpose.xlu0.b32.cont [6/16] 0.0, 128
    %226 = vxpose.xlu0.b32.cont [7/16] 0.0, 128
    %227 = vxpose.xlu0.b32.cont [8/16] 0.0, 128
    %228 = vxpose.xlu0.b32.cont [9/16] 0.0, 128
    %229 = vxpose.xlu0.b32.cont [10/16] 0.0, 128
    %230 = vxpose.xlu0.b32.cont [11/16] 0.0, 128
    %231 = vxpose.xlu0.b32.cont [12/16] 0.0, 128
    %232 = vxpose.xlu0.b32.cont [13/16] 0.0, 128
    %233 = vxpose.xlu0.b32.cont [14/16] 0.0, 128
    %234 = vxpose.xlu0.b32.cont [15/16] 0.0, 128
    %235 = vxpose.xlu0.b32.end [16/16] 0.0, 128
    %v236 = vpop.trf.xlu0
    %v237 = vpop.trf.xlu0
    %v238 = vpop.trf.xlu0
    %v239 = vpop.trf.xlu0
    %v240 = vpop.trf.xlu0
    %v241 = vpop.trf.xlu0
    %v242 = vpop.trf.xlu0
    %v243 = vpop.trf.xlu0
    %v244 = vpop.trf.xlu0
    %v245 = vpop.trf.xlu0
    %v246 = vpop.trf.xlu0
    %v247 = vpop.trf.xlu0
    %v248 = vpop.trf.xlu0
    %v249 = vpop.trf.xlu0
    %v250 = vpop.trf.xlu0
    %v251 = vpop.trf.xlu0
    %v252 = vadd.f32 %v52, %v236
    %253 = vst.msk [vmem:[#allocation8] sm:$0xff] %vm54, %v252
    // Predicated region
    $region34: #{tpu_custom_call.1} parent=1 // pred_check
      _
    $region35: #{tpu_custom_call.1} parent=1 // pred_check_branch
      %255 = sbr.rel (0) target = $region37
    $region36: #{tpu_custom_call.1} parent=1 // pred_region
      %257 = vsyncadd [#allocation4], 0
      %s259 = sshll.u32 [#allocation8], 4
      %s260 = int_to_ptr.vmem [resolvable:$true] %s259
      %s261 = sshll.u32 %s6, 4
      %s262 = int_to_ptr.hbm [resolvable:$true] %s261
      %264 = dma.vmem_to_hbm [thread:$0]  %s260, 128, %s262, [#allocation4]
    $region37: #{tpu_custom_call.1} parent=1 // pred_fallthru
      _
    // Predicated region
    $region38: #{tpu_custom_call.1} parent=1 // pred_check
      _
    $region39: #{tpu_custom_call.1} parent=1 // pred_check_branch
      %266 = sbr.rel (0) target = $region41
    $region40: #{tpu_custom_call.1} parent=1 // pred_region
      %268 = vsyncadd [#allocation10], 0
      %s270 = sshll.u32 [#allocation9], 4
      %s271 = int_to_ptr.vmem [resolvable:$true] %s270
      %s272 = sshll.u32 %s7, 4
      %s273 = int_to_ptr.hbm [resolvable:$true] %s272
      %275 = dma.vmem_to_hbm [thread:$0]  %s271, 16, %s273, [#allocation10]
    $region41: #{tpu_custom_call.1} parent=1 // pred_fallthru
      _
    // Predicated region
    $region42: #{tpu_custom_call.1} parent=1 // pred_check
      _
    $region43: #{tpu_custom_call.1} parent=1 // pred_check_branch
      %277 = sbr.rel (0) target = $region45
    $region44: #{tpu_custom_call.1} parent=1 // pred_region
      %279 = dma.done [#allocation4], 128
    $region45: #{tpu_custom_call.1} parent=1 // pred_fallthru
      _
    // Predicated region
    $region46: #{tpu_custom_call.1} parent=1 // pred_check
      _
    $region47: #{tpu_custom_call.1} parent=1 // pred_check_branch
      %281 = sbr.rel (0) target = $region49
    $region48: #{tpu_custom_call.1} parent=1 // pred_region
      %283 = dma.done [#allocation10], 16
    $region49: #{tpu_custom_call.1} parent=1 // pred_fallthru
      _
    %284 = vsyncpa [#allocation4], 1
    %285 = vsyncpa [#allocation10], 1
    %286 = vsyncpa [#allocation5], 1
    %287 = vsyncpa [#allocation7], 1

</llo_original>
